<compile_context>
chip_gen: v7x
topology: tpu7x:2x2x1
jax: 0.10.0
libtpu: 0.0.40
codegen_flags: <defaults>
</compile_context>

<pallas_src>
import jax
import jax.numpy as jnp
from jax.experimental import pallas as pl
from jax.experimental.pallas import tpu as pltpu


def _mam_ca_kernel(x_ref, w1t_ref, b1_ref, w2t_ref, b2_ref, o_ref):
    """One grid step = one batch tile, fully fused.

    x_ref / o_ref : (Bt, C, HW)  (full C and HW; only the batch dim is tiled)
    w1t_ref/w2t_ref: (C, C)      Linear weights, ALREADY transposed (W.T)
    b1_ref / b2_ref: (1, C)      lane-dense biases
    """
    x = x_ref[...]                                          # keep input dtype

    # Adaptive avg / max pool to 1x1  ==  reduce over the spatial (lane) axis.
    avg = jnp.mean(x, axis=2, dtype=jnp.float32)            # (Bt, C) f32 accum
    mx = jnp.max(x, axis=2).astype(jnp.float32)             # (Bt, C)

    # Tiny MLP, lane-dense: (Bt, C) @ (C, C) -> (Bt, C)   (== pooled @ W.T + b)
    y1 = jnp.dot(avg, w1t_ref[...],
                 preferred_element_type=jnp.float32) + b1_ref[...]
    y2 = jnp.dot(mx, w2t_ref[...],
                 preferred_element_type=jnp.float32) + b2_ref[...]
    scale = jax.nn.sigmoid(jnp.maximum(y1, 0.0) + jnp.maximum(y2, 0.0))  # (Bt, C)

    # Channel-wise rescale in the input dtype (the HBM-bound part).
    o_ref[...] = (x * scale[:, :, None].astype(x.dtype)).astype(o_ref.dtype)


def mam_ca_forward(x, w1, b1, w2, b2):
    """x: (B, C, H, W).  w1, w2: (C, C) PyTorch Linear weights.  b1, b2: (C,)."""
    B, C, H, W = x.shape
    HW = H * W
    x3 = x.reshape(B, C, HW)
    itemsize = jnp.dtype(x.dtype).itemsize

    # ---- VMEM budget & batch-tile selection --------------------------------
    try:
        vmem_cap = int(pltpu.get_tpu_info().vmem_capacity_bytes)
    except Exception:
        vmem_cap = 64 * 1024 * 1024          # conservative: v7x per-TC VMEM
    vmem_limit = (3 * vmem_cap) // 4         # explicit scoped limit with headroom

    per_image = C * HW * itemsize            # one image's x (or out) block
    weight_bytes = 2 * (C * C + C) * 4       # both weights + biases (f32)
    # in + out blocks, each double-buffered (4x per image), must fit ~half limit.
    block_budget = max(4 * per_image, vmem_limit // 2 - 4 * weight_bytes)
    bt_vmem = max(1, block_budget // (4 * per_image))
    # Keep >=2 (ideally 4) grid steps: v7x megacore needs >=2 parallel steps and
    # the auto-pipeline needs something to overlap DMA with.
    target_steps = max(1, min(4, B))
    bt_steps = max(1, B // target_steps)
    Bt = int(max(1, min(8, bt_vmem, bt_steps)))
    grid = (pl.cdiv(B, Bt),)

    # Pre-transpose the tiny Linear weights so the in-kernel matmul output is
    # lane-dense; keep biases as (1, C) rows (plain lane-wise VPU add).
    w1t = jnp.asarray(w1, jnp.float32).T
    w2t = jnp.asarray(w2, jnp.float32).T
    b1r = jnp.asarray(b1, jnp.float32).reshape(1, C)
    b2r = jnp.asarray(b2, jnp.float32).reshape(1, C)

    out3 = pl.pallas_call(
        _mam_ca_kernel,
        out_shape=jax.ShapeDtypeStruct((B, C, HW), x.dtype),
        grid_spec=pltpu.PrefetchScalarGridSpec(
            num_scalar_prefetch=0,
            grid=grid,
            in_specs=[
                pl.BlockSpec((Bt, C, HW), lambda i: (i, 0, 0)),  # x batch tile
                pl.BlockSpec((C, C), lambda i: (0, 0)),          # fc1 weight^T
                pl.BlockSpec((1, C), lambda i: (0, 0)),          # fc1 bias
                pl.BlockSpec((C, C), lambda i: (0, 0)),          # fc2 weight^T
                pl.BlockSpec((1, C), lambda i: (0, 0)),          # fc2 bias
            ],
            out_specs=pl.BlockSpec((Bt, C, HW), lambda i: (i, 0, 0)),
        ),
        compiler_params=pltpu.CompilerParams(
            dimension_semantics=("parallel",),
            vmem_limit_bytes=int(vmem_limit),
        ),
        # NOTE: input_output_aliases={0: 0} would drop the extra HBM output
        # allocation if the caller no longer needs x; left off here because the
        # test still reads x for the reference check.
    )(x3, w1t, b1r, w2t, b2r)

    return out3.reshape(B, C, H, W)


def _reference(x, w1, b1, w2, b2):
    # Pure-JAX reference mirroring the PyTorch forward.
    avg = jnp.mean(x, axis=(2, 3))                        # (B, C)
    mx = jnp.max(x, axis=(2, 3))                          # (B, C)
    a = jax.nn.relu(avg @ w1.T + b1)
    m = jax.nn.relu(mx @ w2.T + b2)
    s = jax.nn.sigmoid(a + m)                             # (B, C)
    return x * s[:, :, None, None]


if __name__ == "__main__":
    # Small deterministic problem: B=2, C=4 (inplane1=4), H=W=16.
    B, C, H, W = 2, 4, 16, 16
    key = jax.random.PRNGKey(0)
    kx, kw1, kb1, kw2, kb2 = jax.random.split(key, 5)

    x = jax.random.normal(kx, (B, C, H, W), dtype=jnp.float32)

    # Deterministic Linear params (PyTorch-style uniform(-1/sqrt(C), 1/sqrt(C))).
    bound = 1.0 / jnp.sqrt(jnp.float32(C))
    w1 = jax.random.uniform(kw1, (C, C), jnp.float32, -bound, bound)
    b1 = jax.random.uniform(kb1, (C,), jnp.float32, -bound, bound)
    w2 = jax.random.uniform(kw2, (C, C), jnp.float32, -bound, bound)
    b2 = jax.random.uniform(kb2, (C,), jnp.float32, -bound, bound)
    # TODO(synk): inplane2 / inplane3 branches (sa, ta) are constructed in
    # __init__ but never used in MAM_CA.forward, so they are omitted.

    out = mam_ca_forward(x, w1, b1, w2, b2)
    out = jax.block_until_ready(out)

    ref = _reference(x, w1, b1, w2, b2)
    assert out.shape == (B, C, H, W)
    assert jnp.allclose(out, ref, atol=1e-5, rtol=1e-5), "mismatch vs reference"

    print("KERNEL_OK")
</pallas_src>

<mosaic_0001>
module attributes {stable_mosaic.version = 11 : i64} {
  func.func @_mam_ca_kernel(%arg0: i32, %arg1: memref<1x4x256xf32, #tpu.memory_space<vmem>>, %arg2: memref<4x4xf32, #tpu.memory_space<vmem>>, %arg3: memref<1x4xf32, #tpu.memory_space<vmem>>, %arg4: memref<4x4xf32, #tpu.memory_space<vmem>>, %arg5: memref<1x4xf32, #tpu.memory_space<vmem>>, %arg6: memref<1x4x256xf32, #tpu.memory_space<vmem>>) attributes {dimension_semantics = [#tpu.dimension_semantics<parallel>], iteration_bounds = array<i64: 2>, scalar_prefetch = 0 : i64, scratch_operands = 0 : i64, tpu.core_type = #tpu.core_type<tc>, window_params = [{transform_indices = @transform_0, window_bounds = array<i64: 1, 4, 256>}, {pipeline_mode = #tpu.pipeline_mode<synchronous>, transform_indices = @transform_1, window_bounds = array<i64: 4, 4>}, {pipeline_mode = #tpu.pipeline_mode<synchronous>, transform_indices = @transform_2, window_bounds = array<i64: 1, 4>}, {pipeline_mode = #tpu.pipeline_mode<synchronous>, transform_indices = @transform_3, window_bounds = array<i64: 4, 4>}, {pipeline_mode = #tpu.pipeline_mode<synchronous>, transform_indices = @transform_4, window_bounds = array<i64: 1, 4>}, {transform_indices = @transform_5, window_bounds = array<i64: 1, 4, 256>}]} {
    %c0 = arith.constant 0 : index
    %c0_0 = arith.constant 0 : index
    %c0_1 = arith.constant 0 : index
    %0 = vector.load %arg1[%c0, %c0_0, %c0_1] : memref<1x4x256xf32, #tpu.memory_space<vmem>>, vector<1x4x256xf32>
    %cst = arith.constant dense<0.000000e+00> : vector<1x4xf32>
    %1 = vector.multi_reduction <add>, %0, %cst [2] : vector<1x4x256xf32> to vector<1x4xf32>
    %cst_2 = arith.constant 2.560000e+02 : f32
    %2 = vector.broadcast %cst_2 : f32 to vector<1x4xf32>
    %3 = arith.divf %1, %2 : vector<1x4xf32>
    %cst_3 = arith.constant dense<0xFF800000> : vector<1x4xf32>
    %4 = vector.multi_reduction <maximumf>, %0, %cst_3 [2] : vector<1x4x256xf32> to vector<1x4xf32>
    %c0_4 = arith.constant 0 : index
    %c0_5 = arith.constant 0 : index
    %5 = vector.load %arg2[%c0_4, %c0_5] : memref<4x4xf32, #tpu.memory_space<vmem>>, vector<4x4xf32>
    %cst_6 = arith.constant dense<0.000000e+00> : vector<1x4xf32>
    %6 = tpu.matmul %3, %5, %cst_6 {dimension_numbers = #tpu.dot_dimension_numbers<[1], [0], [0], [1], [0, 0, 1, 1], [], []>} : vector<1x4xf32>, vector<4x4xf32>, vector<1x4xf32> -> vector<1x4xf32>
    %c0_7 = arith.constant 0 : index
    %c0_8 = arith.constant 0 : index
    %7 = vector.load %arg3[%c0_7, %c0_8] : memref<1x4xf32, #tpu.memory_space<vmem>>, vector<1x4xf32>
    %8 = arith.addf %6, %7 : vector<1x4xf32>
    %c0_9 = arith.constant 0 : index
    %c0_10 = arith.constant 0 : index
    %9 = vector.load %arg4[%c0_9, %c0_10] : memref<4x4xf32, #tpu.memory_space<vmem>>, vector<4x4xf32>
    %cst_11 = arith.constant dense<0.000000e+00> : vector<1x4xf32>
    %10 = tpu.matmul %4, %9, %cst_11 {dimension_numbers = #tpu.dot_dimension_numbers<[1], [0], [0], [1], [0, 0, 1, 1], [], []>} : vector<1x4xf32>, vector<4x4xf32>, vector<1x4xf32> -> vector<1x4xf32>
    %c0_12 = arith.constant 0 : index
    %c0_13 = arith.constant 0 : index
    %11 = vector.load %arg5[%c0_12, %c0_13] : memref<1x4xf32, #tpu.memory_space<vmem>>, vector<1x4xf32>
    %12 = arith.addf %10, %11 : vector<1x4xf32>
    %cst_14 = arith.constant 0.000000e+00 : f32
    %13 = vector.broadcast %cst_14 : f32 to vector<1x4xf32>
    %14 = arith.maximumf %8, %13 : vector<1x4xf32>
    %cst_15 = arith.constant 0.000000e+00 : f32
    %15 = vector.broadcast %cst_15 : f32 to vector<1x4xf32>
    %16 = arith.maximumf %12, %15 : vector<1x4xf32>
    %17 = arith.addf %14, %16 : vector<1x4xf32>
    %18 = arith.negf %17 : vector<1x4xf32>
    %19 = math.exp %18 : vector<1x4xf32>
    %cst_16 = arith.constant 1.000000e+00 : f32
    %20 = vector.broadcast %cst_16 : f32 to vector<1x4xf32>
    %21 = arith.addf %20, %19 : vector<1x4xf32>
    %22 = arith.divf %20, %21 : vector<1x4xf32>
    %23 = vector.shape_cast %22 : vector<1x4xf32> to vector<1x4x1xf32>
    %24 = vector.broadcast %23 : vector<1x4x1xf32> to vector<1x4x256xf32>
    %25 = arith.mulf %0, %24 : vector<1x4x256xf32>
    %c0_17 = arith.constant 0 : index
    %c0_18 = arith.constant 0 : index
    %c0_19 = arith.constant 0 : index
    %26 = vector.load %arg6[%c0_17, %c0_18, %c0_19] : memref<1x4x256xf32, #tpu.memory_space<vmem>>, vector<1x4x256xf32>
    tpu.vector_store %arg6[%c0_17, %c0_18, %c0_19], %25 {strides = array<i32>} : memref<1x4x256xf32, #tpu.memory_space<vmem>>, vector<1x4x256xf32>,
    return
  }
  func.func @transform_0(%arg0: i32) -> (i32, i32, i32) {
    %c0_i32 = arith.constant 0 : i32
    %c0_i32_0 = arith.constant 0 : i32
    %c0_i32_1 = arith.constant 0 : i32
    return %arg0, %c0_i32, %c0_i32_0 : i32, i32, i32
  }
  func.func @transform_1(%arg0: i32) -> (i32, i32) {
    %c0_i32 = arith.constant 0 : i32
    %c0_i32_0 = arith.constant 0 : i32
    %c0_i32_1 = arith.constant 0 : i32
    return %c0_i32, %c0_i32_0 : i32, i32
  }
  func.func @transform_2(%arg0: i32) -> (i32, i32) {
    %c0_i32 = arith.constant 0 : i32
    %c0_i32_0 = arith.constant 0 : i32
    %c0_i32_1 = arith.constant 0 : i32
    return %c0_i32, %c0_i32_0 : i32, i32
  }
  func.func @transform_3(%arg0: i32) -> (i32, i32) {
    %c0_i32 = arith.constant 0 : i32
    %c0_i32_0 = arith.constant 0 : i32
    %c0_i32_1 = arith.constant 0 : i32
    return %c0_i32, %c0_i32_0 : i32, i32
  }
  func.func @transform_4(%arg0: i32) -> (i32, i32) {
    %c0_i32 = arith.constant 0 : i32
    %c0_i32_0 = arith.constant 0 : i32
    %c0_i32_1 = arith.constant 0 : i32
    return %c0_i32, %c0_i32_0 : i32, i32
  }
  func.func @transform_5(%arg0: i32) -> (i32, i32, i32) {
    %c0_i32 = arith.constant 0 : i32
    %c0_i32_0 = arith.constant 0 : i32
    %c0_i32_1 = arith.constant 0 : i32
    return %arg0, %c0_i32, %c0_i32_0 : i32, i32, i32
  }
}

</mosaic_0001>

<llo_original>
// kernel: tpu_custom_call.1
$region0: #{tpu_custom_call.1}
  #allocation0 [shape = 'u32[]', space=smem, size = 0x4, offset = 0x4, fixed_abs, tag = 'smem constant byte address 0x4 - core index']
  #allocation1 [shape = 'u32[144,128]{1,0:T(1,128)}', space=vmem, size = 0x12000, scoped, tag = 'internal scratch']
  %s0 = inlined_call_operand.hbm [shape: f32[2,4,256], index: 0, kind: input, shape index: {}]
  %s1 = inlined_call_operand.hbm [shape: f32[4,4], index: 1, kind: input, shape index: {}]
  %s2 = inlined_call_operand.vmem [shape: f32[1,4], index: 2, kind: input, shape index: {}]
  %s3 = inlined_call_operand.vmem [shape: f32[4,4], index: 3, kind: input, shape index: {}]
  %s4 = inlined_call_operand.vmem [shape: f32[1,4], index: 4, kind: input, shape index: {}]
  %s5 = inlined_call_operand.hbm [shape: f32[2,4,256], index: 5, kind: output, shape index: {}]
  %s6 = sld [smem:[#allocation0]]
  $region61: #{tpu_custom_call.1} parent=0
    _
  %s8 = ssub.s32 1, %s6
  %s9 = scalar_select 0, %s8, %s6
  $region1: #{tpu_custom_call.1} parent=0
    #allocation2 [shape = 'u8[8192]{0}', space=vmem, size = 0x2000, scoped, tag = 'input window, operand 0']
    #allocation3 [shape = 's32[2]{0}', space=sflag, size = 0x8, scoped, tag = 'scoped memory for tpu_custom_call.1']
    #allocation4 [shape = 's32[2]{0}', space=sflag, size = 0x8, scoped, tag = 'scoped memory for tpu_custom_call.1']
    #allocation5 [shape = 'u8[2048]{0}', space=vmem, size = 0x800, scoped, tag = 'input window, operand 1, single buffered']
    #allocation6 [shape = 's32[1]{0}', space=sflag, size = 0x4, scoped, tag = 'scoped memory for tpu_custom_call.1']
    #allocation7 [shape = 'u8[8192]{0}', space=vmem, size = 0x2000, scoped, tag = 'output window, operand 0']
    %10 = vsyncpa [#allocation3], 0
    %s11 = scalar_lea.sflag [#allocation3], 1
    %12 = vsyncpa %s11, 0
    %13 = vsyncpa [#allocation6], 0
    %14 = vsyncpa [#allocation4], 0
    %s15 = scalar_lea.sflag [#allocation4], 1
    %16 = vsyncpa %s15, 0
    loop: start=0, step=1, limit=4
    $region2: #{tpu_custom_call.1} parent=1 // loop_pre_header
      _
    $region3: #{tpu_custom_call.1} parent=1 // loop_header
      %s18 = sphi 0, %s22
      %p19 = scmp.ge.s32.totalorder %s18, 4
      %s28 = sphi 0, %s30
      %s31 = sphi 0, %s28
      %s32 = sphi 0, %s31
      %s48 = sphi 0, %s32
      %s52 = sphi 0, %s52
      %s54 = sphi 0, %s52
      %s55 = sphi 0, %s54
      %s69 = sphi 0, %s55
      %s73 = sphi 0, %s73
      %s75 = sphi 0, %s73
      %s76 = sphi 0, %s75
      %s90 = sphi 0, %s76
      %s94 = sphi 0, %s94
      %s96 = sphi 0, %s94
      %s97 = sphi 0, %s96
      %s111 = sphi 0, %s97
      %s115 = sphi 0, %s115
      %s117 = sphi 0, %s115
      %s118 = sphi 0, %s117
      %s132 = sphi 0, %s118
      %s138 = sphi 0, %s140
      %s141 = sphi 0, %s138
      %s142 = sphi 0, %s141
      %s158 = sphi 0, %s142
    $region4: #{tpu_custom_call.1} parent=1 // loop_header_branch
      %21 = sbr.rel (%p19) target = $region8
    $region5: #{tpu_custom_call.1} parent=1 // loop_body
      %s23 = ssub.s32 %s18, 1
      %s24 = ssub.s32 %s18, 2
      %s25 = sadd.s32 %s18, 1
      %s26 = ssub.s32 %s18, %s25
      %p27 = scmp.eq.s32.totalorder %s26, 0
      %s29 = sadd.s32 %s28, 1
      %s30 = scalar_select %p27, %s28, %s29
      %p33 = pneg %p27
      %p34 = scmp.eq.s32.totalorder %s18, 1
      %p35 = por %p33, %p34
      %p36 = scmp.ne.s32.totalorder %s28, %s31
      %p37 = scmp.eq.s32.totalorder %s18, 0
      %p38 = por %p36, %p37
      %p39 = scmp.ne.s32.totalorder %s28, %s31
      %p40 = scmp.eq.s32.totalorder %s23, 1
      %p41 = por %p39, %p40
      %p42 = scmp.ne.s32.totalorder %s31, %s32
      %p43 = scmp.eq.s32.totalorder %s23, 0
      %p44 = por %p42, %p43
      %p45 = scmp.ne.s32.totalorder %s31, %s32
      %p46 = scmp.eq.s32.totalorder %s24, 1
      %p47 = por %p45, %p46
      %p49 = scmp.ne.s32.totalorder %s32, %s48
      %p50 = scmp.eq.s32.totalorder %s24, 0
      %p51 = por %p49, %p50
      %s53 = sadd.s32 %s52, 1
      %p56 = scmp.eq.s32.totalorder %s18, 1
      %p57 = scmp.ne.s32.totalorder %s52, %s54
      %p58 = scmp.eq.s32.totalorder %s18, 0
      %p59 = por %p57, %p58
      %p60 = scmp.ne.s32.totalorder %s52, %s54
      %p61 = scmp.eq.s32.totalorder %s23, 1
      %p62 = por %p60, %p61
      %p63 = scmp.ne.s32.totalorder %s54, %s55
      %p64 = scmp.eq.s32.totalorder %s23, 0
      %p65 = por %p63, %p64
      %p66 = scmp.ne.s32.totalorder %s54, %s55
      %p67 = scmp.eq.s32.totalorder %s24, 1
      %p68 = por %p66, %p67
      %p70 = scmp.ne.s32.totalorder %s55, %s69
      %p71 = scmp.eq.s32.totalorder %s24, 0
      %p72 = por %p70, %p71
      %s74 = sadd.s32 %s73, 1
      %p77 = scmp.eq.s32.totalorder %s18, 1
      %p78 = scmp.ne.s32.totalorder %s73, %s75
      %p79 = scmp.eq.s32.totalorder %s18, 0
      %p80 = por %p78, %p79
      %p81 = scmp.ne.s32.totalorder %s73, %s75
      %p82 = scmp.eq.s32.totalorder %s23, 1
      %p83 = por %p81, %p82
      %p84 = scmp.ne.s32.totalorder %s75, %s76
      %p85 = scmp.eq.s32.totalorder %s23, 0
      %p86 = por %p84, %p85
      %p87 = scmp.ne.s32.totalorder %s75, %s76
      %p88 = scmp.eq.s32.totalorder %s24, 1
      %p89 = por %p87, %p88
      %p91 = scmp.ne.s32.totalorder %s76, %s90
      %p92 = scmp.eq.s32.totalorder %s24, 0
      %p93 = por %p91, %p92
      %s95 = sadd.s32 %s94, 1
      %p98 = scmp.eq.s32.totalorder %s18, 1
      %p99 = scmp.ne.s32.totalorder %s94, %s96
      %p100 = scmp.eq.s32.totalorder %s18, 0
      %p101 = por %p99, %p100
      %p102 = scmp.ne.s32.totalorder %s94, %s96
      %p103 = scmp.eq.s32.totalorder %s23, 1
      %p104 = por %p102, %p103
      %p105 = scmp.ne.s32.totalorder %s96, %s97
      %p106 = scmp.eq.s32.totalorder %s23, 0
      %p107 = por %p105, %p106
      %p108 = scmp.ne.s32.totalorder %s96, %s97
      %p109 = scmp.eq.s32.totalorder %s24, 1
      %p110 = por %p108, %p109
      %p112 = scmp.ne.s32.totalorder %s97, %s111
      %p113 = scmp.eq.s32.totalorder %s24, 0
      %p114 = por %p112, %p113
      %s116 = sadd.s32 %s115, 1
      %p119 = scmp.eq.s32.totalorder %s18, 1
      %p120 = scmp.ne.s32.totalorder %s115, %s117
      %p121 = scmp.eq.s32.totalorder %s18, 0
      %p122 = por %p120, %p121
      %p123 = scmp.ne.s32.totalorder %s115, %s117
      %p124 = scmp.eq.s32.totalorder %s23, 1
      %p125 = por %p123, %p124
      %p126 = scmp.ne.s32.totalorder %s117, %s118
      %p127 = scmp.eq.s32.totalorder %s23, 0
      %p128 = por %p126, %p127
      %p129 = scmp.ne.s32.totalorder %s117, %s118
      %p130 = scmp.eq.s32.totalorder %s24, 1
      %p131 = por %p129, %p130
      %p133 = scmp.ne.s32.totalorder %s118, %s132
      %p134 = scmp.eq.s32.totalorder %s24, 0
      %p135 = por %p133, %p134
      %s136 = ssub.s32 %s18, %s25
      %p137 = scmp.eq.s32.totalorder %s136, 0
      %s139 = sadd.s32 %s138, 1
      %s140 = scalar_select %p137, %s138, %s139
      %p143 = pneg %p137
      %p144 = scmp.eq.s32.totalorder %s18, 1
      %p145 = por %p143, %p144
      %p146 = scmp.ne.s32.totalorder %s138, %s141
      %p147 = scmp.eq.s32.totalorder %s18, 0
      %p148 = por %p146, %p147
      %p149 = scmp.ne.s32.totalorder %s138, %s141
      %p150 = scmp.eq.s32.totalorder %s23, 1
      %p151 = por %p149, %p150
      %p152 = scmp.ne.s32.totalorder %s141, %s142
      %p153 = scmp.eq.s32.totalorder %s23, 0
      %p154 = por %p152, %p153
      %p155 = scmp.ne.s32.totalorder %s141, %s142
      %p156 = scmp.eq.s32.totalorder %s24, 1
      %p157 = por %p155, %p156
      %p159 = scmp.ne.s32.totalorder %s142, %s158
      %p160 = scmp.eq.s32.totalorder %s24, 0
      %p161 = por %p159, %p160
      %p162 = scmp.le.s32.totalorder 1, %s18
      %p163 = scmp.lt.s32.totalorder %s18, 3
      %p164 = pnand %p162, %p163
      %p165 = pneg %p164
      // Predicated region
      $region9: #{tpu_custom_call.1} parent=5 // pred_check
        _
      $region10: #{tpu_custom_call.1} parent=5 // pred_check_branch
        %167 = sbr.rel (%p164) target = $region12
      $region11: #{tpu_custom_call.1} parent=5 // pred_region
        %s168 = ssub.s32 %s18, 1
        // Predicated region
        $region13: #{tpu_custom_call.1} parent=11 // pred_check
          %p169 = pneg %p65
        $region14: #{tpu_custom_call.1} parent=11 // pred_check_branch
          %171 = sbr.rel (%p169) target = $region16
        $region15: #{tpu_custom_call.1} parent=11 // pred_region
          %s173 = ssub.s32 64, 64
          %174 = vsyncadd [#allocation6], %s173
          %s176 = sshll.u32 [#allocation5], 4
          %s177 = int_to_ptr.vmem [resolvable:$true] %s176
          %179 = dma.hbm_to_vmem [thread:$0]  %s1, 64, %s177, [#allocation6]
        $region16: #{tpu_custom_call.1} parent=11 // pred_fallthru
          _
        // Predicated region
        $region17: #{tpu_custom_call.1} parent=11 // pred_check
          %p180 = pneg %p86
        $region18: #{tpu_custom_call.1} parent=11 // pred_check_branch
          %182 = sbr.rel (%p180) target = $region20
        $region19: #{tpu_custom_call.1} parent=11 // pred_region
          _
        $region20: #{tpu_custom_call.1} parent=11 // pred_fallthru
          _
        // Predicated region
        $region21: #{tpu_custom_call.1} parent=11 // pred_check
          %p183 = pneg %p107
        $region22: #{tpu_custom_call.1} parent=11 // pred_check_branch
          %185 = sbr.rel (%p183) target = $region24
        $region23: #{tpu_custom_call.1} parent=11 // pred_region
          _
        $region24: #{tpu_custom_call.1} parent=11 // pred_fallthru
          _
        // Predicated region
        $region25: #{tpu_custom_call.1} parent=11 // pred_check
          %p186 = pneg %p128
        $region26: #{tpu_custom_call.1} parent=11 // pred_check_branch
          %188 = sbr.rel (%p186) target = $region28
        $region27: #{tpu_custom_call.1} parent=11 // pred_region
          _
        $region28: #{tpu_custom_call.1} parent=11 // pred_fallthru
          _
      $region12: #{tpu_custom_call.1} parent=5 // pred_fallthru
        _
      %p189 = scmp.lt.s32.totalorder %s18, 2
      // Predicated region
      $region29: #{tpu_custom_call.1} parent=5 // pred_check
        %p190 = pneg %p189
      $region30: #{tpu_custom_call.1} parent=5 // pred_check_branch
        %192 = sbr.rel (%p190) target = $region32
      $region31: #{tpu_custom_call.1} parent=5 // pred_region
        // Predicated region
        $region33: #{tpu_custom_call.1} parent=31 // pred_check
          %p193 = pneg %p38
        $region34: #{tpu_custom_call.1} parent=31 // pred_check_branch
          %195 = sbr.rel (%p193) target = $region36
        $region35: #{tpu_custom_call.1} parent=31 // pred_region
          %s196 = sand.u32 %s28, 1
          %s197 = scalar_lea.sflag [#allocation3], %s196
          %s198 = sand.u32 %s28, 1
          %s199 = smul.addr %s198, 8
          %s200 = scalar_lea.vmem [#allocation2], %s199
          %s202 = ssub.s32 128, 128
          %203 = vsyncadd %s197, %s202
          %s204 = smul.addr %s18, 2
          %s205 = smul.addr %s204, 64
          %s206 = scalar_lea.hbm %s0, %s205
          %s208 = sshll.u32 %s200, 4
          %s209 = int_to_ptr.vmem [resolvable:$true] %s208
          %211 = dma.hbm_to_vmem [thread:$0]  %s206, 128, %s209, %s197
        $region36: #{tpu_custom_call.1} parent=31 // pred_fallthru
          _
      $region32: #{tpu_custom_call.1} parent=5 // pred_fallthru
        _
      %p212 = scmp.le.s32.totalorder 1, %s18
      %p213 = scmp.lt.s32.totalorder %s18, 3
      %p214 = pnand %p212, %p213
      %p215 = pneg %p214
      // Predicated region
      $region37: #{tpu_custom_call.1} parent=5 // pred_check
        _
      $region38: #{tpu_custom_call.1} parent=5 // pred_check_branch
        %217 = sbr.rel (%p214) target = $region40
      $region39: #{tpu_custom_call.1} parent=5 // pred_region
        %s218 = ssub.s32 %s18, 1
        %s219 = sand.u32 %s31, 1
        %s220 = scalar_lea.sflag [#allocation3], %s219
        %s221 = sand.u32 %s31, 1
        %s222 = smul.addr %s221, 8
        %s223 = scalar_lea.vmem [#allocation2], %s222
        // Predicated region
        $region41: #{tpu_custom_call.1} parent=39 // pred_check
          %p224 = pneg %p44
        $region42: #{tpu_custom_call.1} parent=39 // pred_check_branch
          %226 = sbr.rel (%p224) target = $region44
        $region43: #{tpu_custom_call.1} parent=39 // pred_region
          %227 = dma.done %s220, 128
        $region44: #{tpu_custom_call.1} parent=39 // pred_fallthru
          _
        // Predicated region
        $region45: #{tpu_custom_call.1} parent=39 // pred_check
          %p228 = pneg %p65
        $region46: #{tpu_custom_call.1} parent=39 // pred_check_branch
          %230 = sbr.rel (%p228) target = $region48
        $region47: #{tpu_custom_call.1} parent=39 // pred_region
          %231 = dma.done [#allocation6], 64
        $region48: #{tpu_custom_call.1} parent=39 // pred_fallthru
          _
        %s232 = sand.u32 %s31, 1
        %s233 = scalar_lea.sflag [#allocation3], %s232
        %s234 = sand.u32 %s31, 1
        %s235 = smul.addr %s234, 8
        %s236 = scalar_lea.vmem [#allocation2], %s235
        %p237 = pneg %p44
        %p238 = pneg %p41
        %p239 = pneg %p65
        %p240 = pneg %p62
        %p241 = pneg %p86
        %p242 = pneg %p83
        %p243 = pneg %p107
        %p244 = pneg %p104
        %p245 = pneg %p128
        %p246 = pneg %p125
        %p247 = pneg %p154
        %p248 = pneg %p151
        %s249 = sand.u32 %s141, 1
        %s250 = scalar_lea.sflag [#allocation4], %s249
        %s251 = sand.u32 %s141, 1
        %s252 = smul.addr %s251, 8
        %s253 = scalar_lea.vmem [#allocation7], %s252
        %v254 = vld [vmem:[%s223] sm:$0xff]
        %v256 = vcombine.high %v254, %v254
        %vm258 = vcmask 1043456
        %v259 = vsel %vm258, %v254, 0.0
        %v260 = vsel %vm258, %v256, 0.0
        %v261 = vadd.f32 %v259, %v260
        %262 = vadd.xlane.f32.xlu0 %v261
        %v263 = vpop.xlane.xlu0 %262
        %v264 = vrcp.pop 256.0
        %v265 = vmul.f32 %v263, %v264
        %v266 = vsel %vm258, %v254, -inf
        %v267 = vsel %vm258, %v256, -inf
        %v268 = vmax.f32 %v266, %v267
        %269 = vmax.xlane.f32.xlu0 %v268
        %v270 = vpop.xlane.xlu0 %269
        %v271 = vld [vmem:[#allocation5] sm:$0xf]
        %v272 = vld [vmem:[%s2] sm:$0x1]
        %v274 = vlaneseq
        %v275 = vand.u32 %v274, 127
        %v276 = vlaneseq
        %v277 = vshrl.u32 %v276, 7
        %v278 = vsub.s32 %v275, %v277
        %v279 = vrot.slane %v265, %v278
        %vm280 = vcmask 31744
        %v281 = vsel %vm280, %v279, 0
        %v284 = vsel %vm258, %v271, 0
        %286 = vmatprep.subr.mxu0 0.0
        %287 = vmatpush1.msra.mxu0 %v284
        %288 = vmatprep.subr.mxu0 0.0
        %289 = vmatpush1.msra.mxu0 0.0
        %290 = vmatprep.subr.mxu0 0.0
        %291 = vmatpush1.msra.mxu0 0.0
        %292 = vmatprep.subr.mxu0 0.0
        %293 = vmatpush1.msra.mxu0 0.0
        %294 = vmatprep.subr.mxu0 0.0
        %295 = vmatpush1.msra.mxu0 0.0
        %296 = vmatprep.subr.mxu0 0.0
        %297 = vmatpush1.msra.mxu0 0.0
        %298 = vmatprep.subr.mxu0 0.0
        %299 = vmatpush1.msra.mxu0 0.0
        %300 = vmatprep.subr.mxu0 0.0
        %301 = vmatpush1.msra.mxu0 0.0
        %302 = vmatprep.subr.mxu0 0.0
        %303 = vmatpush1.msra.mxu0 0.0
        %304 = vmatprep.subr.mxu0 0.0
        %305 = vmatpush1.msra.mxu0 0.0
        %306 = vmatprep.subr.mxu0 0.0
        %307 = vmatpush1.msra.mxu0 0.0
        %308 = vmatprep.subr.mxu0 0.0
        %309 = vmatpush1.msra.mxu0 0.0
        %310 = vmatprep.subr.mxu0 0.0
        %311 = vmatpush1.msra.mxu0 0.0
        %312 = vmatprep.subr.mxu0 0.0
        %313 = vmatpush1.msra.mxu0 0.0
        %314 = vmatprep.subr.mxu0 0.0
        %315 = vmatpush1.msra.mxu0 0.0
        %316 = vmatprep.subr.mxu0 0.0
        %317 = vmatpush1.msra.mxu0 0.0
        %318 = vmatprep.subr.mxu0 0.0
        %319 = vmatpush1.msra.mxu0 0.0
        %320 = vmatprep.subr.mxu0 0.0
        %321 = vmatpush1.msra.mxu0 0.0
        %322 = vmatprep.subr.mxu0 0.0
        %323 = vmatpush1.msra.mxu0 0.0
        %324 = vmatprep.subr.mxu0 0.0
        %325 = vmatpush1.msra.mxu0 0.0
        %326 = vmatprep.subr.mxu0 0.0
        %327 = vmatpush1.msra.mxu0 0.0
        %328 = vmatprep.subr.mxu0 0.0
        %329 = vmatpush1.msra.mxu0 0.0
        %330 = vmatprep.subr.mxu0 0.0
        %331 = vmatpush1.msra.mxu0 0.0
        %332 = vmatprep.subr.mxu0 0.0
        %333 = vmatpush1.msra.mxu0 0.0
        %334 = vmatprep.subr.mxu0 0.0
        %335 = vmatpush1.msra.mxu0 0.0
        %336 = vmatprep.subr.mxu0 0.0
        %337 = vmatpush1.msra.mxu0 0.0
        %338 = vmatprep.subr.mxu0 0.0
        %339 = vmatpush1.msra.mxu0 0.0
        %340 = vmatprep.subr.mxu0 0.0
        %341 = vmatpush1.msra.mxu0 0.0
        %342 = vmatprep.subr.mxu0 0.0
        %343 = vmatpush1.msra.mxu0 0.0
        %344 = vmatprep.subr.mxu0 0.0
        %345 = vmatpush1.msra.mxu0 0.0
        %346 = vmatprep.subr.mxu0 0.0
        %347 = vmatpush1.msra.mxu0 0.0
        %348 = vmatprep.subr.mxu0 0.0
        %349 = vmatpush1.msra.mxu0 0.0
        %350 = vmatprep.mubr.f32.mxu0 0.0
        %351 = vmatmul.mubr.f32.gmra.mrb[0].mxu0 %v281
        %v352 = vpop.f32.mrb[0].mxu0
        %v353 = vadd.f32 %v272, %v352
        %v354 = vpop.f32.mrb[0].mxu0
        %355 = vdwg.mxu0
        %v356 = vld [vmem:[%s3] sm:$0xf]
        %v357 = vld [vmem:[%s4] sm:$0x1]
        %v359 = vlaneseq
        %v360 = vshrl.u32 %v359, 7
        %v361 = vsub.s32 %v275, %v360
        %v362 = vrot.slane %v270, %v361
        %v363 = vsel %vm280, %v362, 0
        %v366 = vsel %vm258, %v356, 0
        %368 = vmatprep.subr.mxu0 0.0
        %369 = vmatpush1.msra.mxu0 %v366
        %370 = vmatprep.subr.mxu0 0.0
        %371 = vmatpush1.msra.mxu0 0.0
        %372 = vmatprep.subr.mxu0 0.0
        %373 = vmatpush1.msra.mxu0 0.0
        %374 = vmatprep.subr.mxu0 0.0
        %375 = vmatpush1.msra.mxu0 0.0
        %376 = vmatprep.subr.mxu0 0.0
        %377 = vmatpush1.msra.mxu0 0.0
        %378 = vmatprep.subr.mxu0 0.0
        %379 = vmatpush1.msra.mxu0 0.0
        %380 = vmatprep.subr.mxu0 0.0
        %381 = vmatpush1.msra.mxu0 0.0
        %382 = vmatprep.subr.mxu0 0.0
        %383 = vmatpush1.msra.mxu0 0.0
        %384 = vmatprep.subr.mxu0 0.0
        %385 = vmatpush1.msra.mxu0 0.0
        %386 = vmatprep.subr.mxu0 0.0
        %387 = vmatpush1.msra.mxu0 0.0
        %388 = vmatprep.subr.mxu0 0.0
        %389 = vmatpush1.msra.mxu0 0.0
        %390 = vmatprep.subr.mxu0 0.0
        %391 = vmatpush1.msra.mxu0 0.0
        %392 = vmatprep.subr.mxu0 0.0
        %393 = vmatpush1.msra.mxu0 0.0
        %394 = vmatprep.subr.mxu0 0.0
        %395 = vmatpush1.msra.mxu0 0.0
        %396 = vmatprep.subr.mxu0 0.0
        %397 = vmatpush1.msra.mxu0 0.0
        %398 = vmatprep.subr.mxu0 0.0
        %399 = vmatpush1.msra.mxu0 0.0
        %400 = vmatprep.subr.mxu0 0.0
        %401 = vmatpush1.msra.mxu0 0.0
        %402 = vmatprep.subr.mxu0 0.0
        %403 = vmatpush1.msra.mxu0 0.0
        %404 = vmatprep.subr.mxu0 0.0
        %405 = vmatpush1.msra.mxu0 0.0
        %406 = vmatprep.subr.mxu0 0.0
        %407 = vmatpush1.msra.mxu0 0.0
        %408 = vmatprep.subr.mxu0 0.0
        %409 = vmatpush1.msra.mxu0 0.0
        %410 = vmatprep.subr.mxu0 0.0
        %411 = vmatpush1.msra.mxu0 0.0
        %412 = vmatprep.subr.mxu0 0.0
        %413 = vmatpush1.msra.mxu0 0.0
        %414 = vmatprep.subr.mxu0 0.0
        %415 = vmatpush1.msra.mxu0 0.0
        %416 = vmatprep.subr.mxu0 0.0
        %417 = vmatpush1.msra.mxu0 0.0
        %418 = vmatprep.subr.mxu0 0.0
        %419 = vmatpush1.msra.mxu0 0.0
        %420 = vmatprep.subr.mxu0 0.0
        %421 = vmatpush1.msra.mxu0 0.0
        %422 = vmatprep.subr.mxu0 0.0
        %423 = vmatpush1.msra.mxu0 0.0
        %424 = vmatprep.subr.mxu0 0.0
        %425 = vmatpush1.msra.mxu0 0.0
        %426 = vmatprep.subr.mxu0 0.0
        %427 = vmatpush1.msra.mxu0 0.0
        %428 = vmatprep.subr.mxu0 0.0
        %429 = vmatpush1.msra.mxu0 0.0
        %430 = vmatprep.subr.mxu0 0.0
        %431 = vmatpush1.msra.mxu0 0.0
        %432 = vmatprep.mubr.f32.mxu0 0.0
        %433 = vmatmul.mubr.f32.gmra.mrb[0].mxu0 %v363
        %v434 = vpop.f32.mrb[0].mxu0
        %v435 = vadd.f32 %v357, %v434
        %v436 = vpop.f32.mrb[0].mxu0
        %437 = vdwg.mxu0
        %v438 = vmax.f32 %v353, 0.0
        %v439 = vmax.f32 %v435, 0.0
        %v440 = vadd.f32 %v438, %v439
        %v441 = vxor.u32 %v440, 2147483648
        %v442 = vmul.f32 %v441, 1.442695
        %v443 = vpow.pop %v442
        %v444 = vadd.f32 %v443, 1.0
        %v445 = vrcp.pop %v444
        %v446 = vmul.f32 1.0, %v445
        %v447 = vlaneseq
        %v448 = vshrl.u32 %v447, 7
        %v449 = vsub.s32 0, %v448
        %v450 = vrot.slane %v446, %v449
        %452 = vbcast.lane.b32.xlu0 %v450, 256
        %v453 = vpop.permute.xlu0 %452
        %v456 = vunpack.c.l.s4 839922192
        %v457 = vunpack.c.0.s8 %v456
        %v458 = vlaneseq
        %v459 = vshrl.u32 %v458, 7
        %v460 = vsub.s32 %v457, %v459
        %v461 = vrot.slane %v453, %v460
        %v463 = vmul.f32 %v254, %v461
        %464 = vst [vmem:[%s253] sm:$0xff] %v463
        %s465 = sand.u32 %s141, 1
        %s466 = scalar_lea.sflag [#allocation4], %s465
        %s467 = sand.u32 %s141, 1
        %s468 = smul.addr %s467, 8
        %s469 = scalar_lea.vmem [#allocation7], %s468
        // Predicated region
        $region49: #{tpu_custom_call.1} parent=39 // pred_check
          %p470 = pneg %p151
        $region50: #{tpu_custom_call.1} parent=39 // pred_check_branch
          %472 = sbr.rel (%p470) target = $region52
        $region51: #{tpu_custom_call.1} parent=39 // pred_region
          %s474 = ssub.s32 128, 128
          %475 = vsyncadd %s466, %s474
          %s476 = smul.addr %s23, 2
          %s477 = smul.addr %s476, 64
          %s478 = scalar_lea.hbm %s5, %s477
          %s480 = sshll.u32 %s469, 4
          %s481 = int_to_ptr.vmem [resolvable:$true] %s480
          %483 = dma.vmem_to_hbm [thread:$0]  %s481, 128, %s478, %s466
        $region52: #{tpu_custom_call.1} parent=39 // pred_fallthru
          _
      $region40: #{tpu_custom_call.1} parent=5 // pred_fallthru
        _
      %p484 = scmp.le.s32.totalorder 2, %s18
      // Predicated region
      $region53: #{tpu_custom_call.1} parent=5 // pred_check
        %p485 = pneg %p484
      $region54: #{tpu_custom_call.1} parent=5 // pred_check_branch
        %487 = sbr.rel (%p485) target = $region56
      $region55: #{tpu_custom_call.1} parent=5 // pred_region
        %s488 = ssub.s32 %s18, 2
        // Predicated region
        $region57: #{tpu_custom_call.1} parent=55 // pred_check
          %p489 = pneg %p157
        $region58: #{tpu_custom_call.1} parent=55 // pred_check_branch
          %491 = sbr.rel (%p489) target = $region60
        $region59: #{tpu_custom_call.1} parent=55 // pred_region
          %s492 = sand.u32 %s142, 1
          %s493 = scalar_lea.sflag [#allocation4], %s492
          %s494 = sand.u32 %s142, 1
          %s495 = smul.addr %s494, 8
          %s496 = scalar_lea.vmem [#allocation7], %s495
          %497 = dma.done %s493, 128
        $region60: #{tpu_custom_call.1} parent=55 // pred_fallthru
          _
      $region56: #{tpu_custom_call.1} parent=5 // pred_fallthru
        _
    $region6: #{tpu_custom_call.1} parent=1 // loop_footer
      %s22 = sadd.s32 1, %s18
    $region7: #{tpu_custom_call.1} parent=1 // loop_footer_branch
      %17 = sbr.rel target = $region3
    $region8: #{tpu_custom_call.1} parent=1 // loop_exit
      _
    %498 = vsyncpa [#allocation3], 1
    %s499 = scalar_lea.sflag [#allocation3], 1
    %500 = vsyncpa %s499, 1
    %501 = vsyncpa [#allocation6], 1
    %502 = vsyncpa [#allocation4], 1
    %s503 = scalar_lea.sflag [#allocation4], 1
    %504 = vsyncpa %s503, 1

</llo_original>
